<compile_context>
chip_gen: v5e
topology: v5e:2x2
jax: 0.10.0
libtpu: 0.0.40
codegen_flags: <defaults>
</compile_context>

<pallas_src>
import jax
import jax.numpy as jnp
from jax.experimental import pallas as pl
from jax.experimental.pallas import tpu as pltpu


# ------------------------------ small helpers --------------------------------
def _round_up(x, m):
    return ((x + m - 1) // m) * m


def _vmem_capacity_bytes():
    """Physical VMEM per core; conservative fallback if the query fails."""
    try:
        cap = int(getattr(pltpu.get_tpu_info(), "vmem_capacity_bytes"))
        if cap > 0:
            return cap
    except Exception:
        pass
    return 64 * 1024 * 1024          # v7x per-core value (most restrictive)


def _padded_row_bytes(width, itemsize):
    # one batch row of a streamed (TB, width) block, lane-padded to 128
    return _round_up(width, 128) * itemsize


def _padded_nbytes(a):
    # (8, 128)-padded VMEM footprint of a resident 2-D constant
    r, c = a.shape
    return _round_up(r, 8) * _round_up(c, 128) * a.dtype.itemsize


def _auto_tile(batch, requested_tb, row_bytes, const_bytes):
    """Pick a batch tile + vmem limit that fit this chip generation's VMEM."""
    cap = _vmem_capacity_bytes()
    budget = (cap * 3) // 4                      # headroom for Mosaic scratch
    b8 = _round_up(max(int(batch), 8), 8)
    if requested_tb >= b8:
        tb = b8                                  # whole batch in one grid step
    else:
        tb = max(128, (requested_tb // 128) * 128)
    # streamed blocks are double-buffered; resident weights ~single-buffered
    while tb > 128 and 2 * tb * row_bytes + const_bytes > budget:
        tb = max(128, ((tb // 2) // 128) * 128)
    need = 2 * tb * row_bytes + const_bytes
    vmem_limit = int(max(32 << 20, min(budget, 2 * need + (4 << 20))))
    return tb, vmem_limit


# ----------------------------- Pallas kernel ---------------------------------
def make_widedeep_kernel(n_sparse, vocab_dims, n_hidden, compute_dtype):
    """Fused WideDeep forward for one batch tile (static config baked in)."""

    def kernel(*refs):
        dense_ref, ids_ref, oh_ref = refs[0], refs[1], refs[2]
        ww_d_ref, ww_oh_ref, hb_ref = refs[3], refs[4], refs[5]
        pos = 6
        fused_refs = refs[pos:pos + n_sparse]; pos += n_sparse
        b0_ref = refs[pos]; pos += 1
        mid_refs = []
        for _ in range(n_hidden - 1):
            mid_refs.append((refs[pos], refs[pos + 1])); pos += 2
        wo_ref = refs[pos]
        out_ref = refs[pos + 1]

        dense_x = dense_ref[...]                               # (TB, nd)  f32
        ids = ids_ref[...]                                     # (TB, ns)  i32
        onehot_x = oh_ref[...].astype(jnp.float32)             # (TB, sumV) f32
        tb = dense_x.shape[0]

        # ---- wide head: VPU multiply + row-reduce (keeps the MXU free) ------
        # TODO(synk): if profiling shows the XLU row-reduce binding once the
        # input DMA is cut, move this to an MXU dot (onehot_x @ ww_oh.T).
        wide = (jnp.sum(dense_x * ww_d_ref[...], axis=-1, keepdims=True)
                + jnp.sum(onehot_x * ww_oh_ref[...], axis=-1, keepdims=True))

        # ---- deep side: embedding gather + first Linear, pre-fused ----------
        # fused_refs[i] = table_i @ w0_i  (V_i, H0): one one-hot matmul per
        # sparse feature; the concat over embeddings becomes a running sum.
        # TODO(synk): out-of-range / negative ids give an all-zero one-hot
        # (silent zero embedding) instead of the error nn.Embedding would raise.
        # TODO(synk): for very many sparse features, build a single padded
        # (TB, sum(V)) one-hot and issue one MXU dot for the whole stage.
        h = b0_ref[...]                                        # (1, H0) f32
        for i in range(n_sparse):
            oh_i = (ids[:, i:i + 1] ==
                    jax.lax.broadcasted_iota(jnp.int32, (tb, vocab_dims[i]), 1)
                    ).astype(compute_dtype)
            h = h + jnp.dot(oh_i, fused_refs[i][...],
                            preferred_element_type=jnp.float32)   # (TB, H0)
        h = jnp.maximum(h, 0.0)
        for w_ref, b_ref in mid_refs:
            h = jnp.dot(h.astype(compute_dtype), w_ref[...],
                        preferred_element_type=jnp.float32) + b_ref[...]
            h = jnp.maximum(h, 0.0)
        deep = jnp.dot(h.astype(compute_dtype), wo_ref[...],
                       preferred_element_type=jnp.float32)        # (TB, od)

        # ---- fused head: sigmoid(0.5 * (wide + deep + (wb + bo))) -----------
        logit = 0.5 * (wide + deep + hb_ref[...])
        # Lane-dense store: batch on the lane axis (unmasked vst).
        out_ref[...] = jnp.transpose(jax.nn.sigmoid(logit))       # (od, TB)

    return kernel


def widedeep_pallas(dense, ids, onehot, kp, *, vocab_dims, n_hidden, out_dim,
                    tb=512, compute_dtype=jnp.bfloat16):
    """Run the fused WideDeep Pallas kernel over a batch-tiled grid."""
    B, n_dense = dense.shape
    n_sparse = ids.shape[1]
    sum_v = onehot.shape[1]
    assert sum_v == sum(vocab_dims), "one-hot block width != sum(vocab_dims)"
    ids = ids.astype(jnp.int32)

    mids_flat = [a for w_b in kp["mids"] for a in w_b]
    const_ops = ([kp["ww_d"], kp["ww_oh"], kp["hb"]]
                 + list(kp["fused_w0"]) + [kp["b0"]] + mids_flat + [kp["wo"]])

    # --- generation-aware tile / VMEM budgeting (v7x 64 MiB, v5e/v6e 128 MiB)
    row_bytes = (_padded_row_bytes(n_dense, dense.dtype.itemsize)
                 + _padded_row_bytes(n_sparse, 4)
                 + _padded_row_bytes(sum_v, onehot.dtype.itemsize)
                 + _round_up(out_dim, 8) * 4)       # lane-dense f32 output
    const_bytes = sum(_padded_nbytes(a) for a in const_ops)
    tb, vmem_limit = _auto_tile(B, tb, row_bytes, const_bytes)

    b_pad = ((B + tb - 1) // tb) * tb
    if b_pad != B:
        dense = jnp.pad(dense, ((0, b_pad - B), (0, 0)))
        ids = jnp.pad(ids, ((0, b_pad - B), (0, 0)))
        onehot = jnp.pad(onehot, ((0, b_pad - B), (0, 0)))
    num_tiles = b_pad // tb        # NOTE: keep >= 2 on v7x to feed both TCs.

    kernel = make_widedeep_kernel(n_sparse, tuple(vocab_dims), n_hidden,
                                  compute_dtype)

    def build(single_buffer_consts):
        def const_spec(arr):
            nd = arr.ndim
            if single_buffer_consts:
                # Resident weights are fetched once; single-buffering halves
                # their VMEM footprint (matters for v7x's 64 MiB/core VMEM).
                return pl.BlockSpec(arr.shape, lambda i, _n=nd: (0,) * _n,
                                    pipeline_mode=pl.Buffered(buffer_count=1))
            return pl.BlockSpec(arr.shape, lambda i, _n=nd: (0,) * _n)

        in_specs = [pl.BlockSpec((tb, n_dense), lambda i: (i, 0)),
                    pl.BlockSpec((tb, n_sparse), lambda i: (i, 0)),
                    pl.BlockSpec((tb, sum_v), lambda i: (i, 0))]
        in_specs += [const_spec(a) for a in const_ops]
        out_specs = pl.BlockSpec((out_dim, tb), lambda i: (0, i))

        return pl.pallas_call(
            kernel,
            grid=(num_tiles,),
            in_specs=in_specs,
            out_specs=out_specs,
            out_shape=jax.ShapeDtypeStruct((out_dim, b_pad), jnp.float32),
            compiler_params=pltpu.CompilerParams(
                dimension_semantics=("parallel",),
                vmem_limit_bytes=vmem_limit),
        )

    operands = [dense, ids, onehot] + const_ops
    try:
        out_t = build(True)(*operands)
    except Exception:
        # pl.Buffered(1) pipeline hint unsupported on this jax/libtpu combo;
        # fall back to default double-buffering (correctness unaffected).
        out_t = build(False)(*operands)

    return out_t[:, :B].T                                      # (B, out_dim)


# ------------------------------- Model glue ----------------------------------
class WideDeepJAX:
    def __init__(self, key, n_dense, sparse_one_hot_dim, sparse_embed_dim,
                 hidden_units, output_dim):
        self.n_dense = n_dense
        self.n_sparse = len(sparse_one_hot_dim)
        self.sparse_one_hot_dim = list(sparse_one_hot_dim)
        self.sparse_embed_dim = list(sparse_embed_dim)
        self.hidden_units = list(hidden_units)
        self.output_dim = output_dim
        self.n_features = n_dense + sum(sparse_one_hot_dim)
        deep_in = sum(sparse_embed_dim)
        units = [deep_in] + self.hidden_units

        n_keys = 2 + 2 * len(self.hidden_units) + 2 + self.n_sparse
        keys = iter(jax.random.split(key, n_keys))

        def linear(kw, kb, din, dout):
            # PyTorch-like uniform init; weights stored [in, out] (y = x @ W + b)
            bound = 1.0 / float(din) ** 0.5
            w = jax.random.uniform(kw, (din, dout), jnp.float32, -bound, bound)
            b = jax.random.uniform(kb, (1, dout), jnp.float32, -bound, bound)
            return w, b

        p = {}
        # wide Linear(n_features -> 1), stored as a row for the VPU path
        ww, wb = linear(next(keys), next(keys), self.n_features, 1)
        p["ww_row"], p["wb"] = ww.T, wb                        # (1, F), (1, 1)
        # deep hidden layers
        p["deep_ws"], p["deep_bs"] = [], []
        for i in range(len(self.hidden_units)):
            w, b = linear(next(keys), next(keys), units[i], units[i + 1])
            p["deep_ws"].append(w); p["deep_bs"].append(b)
        # deep output layer
        p["wo"], p["bo"] = linear(next(keys), next(keys),
                                  self.hidden_units[-1], output_dim)
        self.params = p
        # embedding tables (nn.Embedding default: N(0, 1))
        self.embeds = [
            jax.random.normal(next(keys),
                              (self.sparse_one_hot_dim[i], self.sparse_embed_dim[i]),
                              jnp.float32)
            for i in range(self.n_sparse)
        ]
        self._kp_cache = {}

    def _kernel_params(self, compute_dtype):
        name = jnp.dtype(compute_dtype).name
        if name in self._kp_cache:
            return self._kp_cache[name]
        p, nd, cdt = self.params, self.n_dense, compute_dtype
        # Pre-fuse each embedding table into its slice of the first deep layer:
        #   fused_i = table_i @ w0[off:off+E_i, :]   (V_i, H0)
        # product computed in f32 (same matmul path as the reference), then
        # cast ONCE to the compute dtype.
        w0 = p["deep_ws"][0]
        fused, off = [], 0
        for i, e in enumerate(self.sparse_embed_dim):
            fused_i = jnp.dot(self.embeds[i], w0[off:off + e, :])   # f32
            fused.append(fused_i.astype(cdt))
            off += e
        kp = dict(
            ww_d=p["ww_row"][:, :nd],                          # f32 (VPU path)
            ww_oh=p["ww_row"][:, nd:],                         # f32 (VPU path)
            hb=p["wb"] + p["bo"],                              # folded head bias
            fused_w0=fused,
            b0=p["deep_bs"][0],
            mids=[(w.astype(cdt), b)
                  for w, b in zip(p["deep_ws"][1:], p["deep_bs"][1:])],
            wo=p["wo"].astype(cdt),
        )
        self._kp_cache[name] = kp
        return kp

    def forward(self, x, compute_dtype=jnp.bfloat16, tb=512,
                onehot_dtype=jnp.int8):
        """x = [dense | category ids (as float) | one-hot block] like the torch module."""
        nd, ns = self.n_dense, self.n_sparse
        # Split the slab once at the XLA level; the kernel then streams three
        # narrow operands (dense f32 / ids int32 / one-hot int8).
        dense = x[:, :nd].astype(jnp.float32)
        ids = x[:, nd:nd + ns].astype(jnp.int32)       # trunc toward zero, like .to(int64)
        # NOTE: pass onehot_dtype=jnp.float32 if the "one-hot" block is not 0/1.
        onehot = x[:, nd + ns:].astype(onehot_dtype)
        return self.forward_split(dense, ids, onehot,
                                  compute_dtype=compute_dtype, tb=tb)

    def forward_split(self, dense, ids, onehot, compute_dtype=jnp.bfloat16,
                      tb=512):
        kp = self._kernel_params(compute_dtype)
        return widedeep_pallas(
            dense, ids, onehot, kp,
            vocab_dims=tuple(self.sparse_one_hot_dim),
            n_hidden=len(self.hidden_units), out_dim=self.output_dim,
            tb=tb, compute_dtype=compute_dtype)

    def forward_reference(self, x):
        # pure-JAX f32 reference of the PyTorch forward (correctness check)
        nd, ns = self.n_dense, self.n_sparse
        dense_x = x[:, :nd]
        cat = x[:, nd:nd + ns].astype(jnp.int32)
        oh = x[:, nd + ns:]
        p = self.params
        wide = jnp.concatenate([dense_x, oh], -1) @ p["ww_row"].T + p["wb"]
        deep_x = jnp.concatenate([self.embeds[i][cat[:, i]] for i in range(ns)], -1)
        h = deep_x
        for w, b in zip(p["deep_ws"], p["deep_bs"]):
            h = jnp.maximum(h @ w + b, 0.0)
        deep = h @ p["wo"] + p["bo"]
        return jax.nn.sigmoid(0.5 * (wide + deep))


# --------------------------------- Driver -------------------------------------
if __name__ == "__main__":
    key = jax.random.PRNGKey(0)
    k_model, k_dense, k_cat, k_oh = jax.random.split(key, 4)

    # small synthetic config
    B = 8
    n_dense = 4
    sparse_one_hot_dim = [8, 12, 16]
    sparse_embed_dim = [4, 4, 8]
    hidden_units = [32, 16]
    output_dim = 1
    n_sparse = len(sparse_one_hot_dim)

    model = WideDeepJAX(k_model, n_dense, sparse_one_hot_dim, sparse_embed_dim,
                        hidden_units, output_dim)

    # x = [dense | sparse category ids (as float) | one-hot block]
    dense = jax.random.normal(k_dense, (B, n_dense), jnp.float32)
    cat_keys = jax.random.split(k_cat, n_sparse)
    cat_cols = [
        jax.random.randint(cat_keys[i], (B, 1), 0, sparse_one_hot_dim[i])
        .astype(jnp.float32)
        for i in range(n_sparse)
    ]
    cats = jnp.concatenate(cat_cols, axis=-1)
    one_hot = (jax.random.uniform(k_oh, (B, sum(sparse_one_hot_dim)), jnp.float32)
               < 0.2).astype(jnp.float32)
    x = jnp.concatenate([dense, cats, one_hot], axis=-1)

    ref = jax.block_until_ready(model.forward_reference(x))

    # 1) exact-math path (f32 compute) -> tight tolerance
    out_f32 = jax.block_until_ready(model.forward(x, compute_dtype=jnp.float32))
    assert out_f32.shape == (B, output_dim)
    assert jnp.allclose(out_f32, ref, rtol=1e-4, atol=1e-5), "f32 kernel mismatch"

    # 2) performance path (bf16 MXU dots, f32 accumulation) -> bf16 tolerance
    out_bf16 = jax.block_until_ready(model.forward(x, compute_dtype=jnp.bfloat16))
    assert out_bf16.shape == (B, output_dim)
    assert jnp.allclose(out_bf16, ref, rtol=2e-2, atol=2e-2), "bf16 kernel mismatch"

    print("KERNEL_OK")
</pallas_src>

<mosaic_0001>
module attributes {stable_mosaic.version = 11 : i64} {
  func.func @kernel(%arg0: i32, %arg1: memref<8x4xf32, #tpu.memory_space<vmem>>, %arg2: memref<8x3xi32, #tpu.memory_space<vmem>>, %arg3: memref<8x36xi8, #tpu.memory_space<vmem>>, %arg4: memref<1x4xf32, #tpu.memory_space<vmem>>, %arg5: memref<1x36xf32, #tpu.memory_space<vmem>>, %arg6: memref<1x1xf32, #tpu.memory_space<vmem>>, %arg7: memref<8x32xf32, #tpu.memory_space<vmem>>, %arg8: memref<12x32xf32, #tpu.memory_space<vmem>>, %arg9: memref<16x32xf32, #tpu.memory_space<vmem>>, %arg10: memref<1x32xf32, #tpu.memory_space<vmem>>, %arg11: memref<32x16xf32, #tpu.memory_space<vmem>>, %arg12: memref<1x16xf32, #tpu.memory_space<vmem>>, %arg13: memref<16x1xf32, #tpu.memory_space<vmem>>, %arg14: memref<1x8xf32, #tpu.memory_space<vmem>>) attributes {dimension_semantics = [#tpu.dimension_semantics<parallel>], iteration_bounds = array<i64: 1>, scalar_prefetch = 0 : i64, scratch_operands = 0 : i64, tpu.core_type = #tpu.core_type<tc>, window_params = [{transform_indices = @transform_0, window_bounds = array<i64: 8, 4>}, {transform_indices = @transform_1, window_bounds = array<i64: 8, 3>}, {transform_indices = @transform_2, window_bounds = array<i64: 8, 36>}, {pipeline_mode = #tpu.pipeline_mode<synchronous>, transform_indices = @transform_3, window_bounds = array<i64: 1, 4>}, {pipeline_mode = #tpu.pipeline_mode<synchronous>, transform_indices = @transform_4, window_bounds = array<i64: 1, 36>}, {pipeline_mode = #tpu.pipeline_mode<synchronous>, transform_indices = @transform_5, window_bounds = array<i64: 1, 1>}, {pipeline_mode = #tpu.pipeline_mode<synchronous>, transform_indices = @transform_6, window_bounds = array<i64: 8, 32>}, {pipeline_mode = #tpu.pipeline_mode<synchronous>, transform_indices = @transform_7, window_bounds = array<i64: 12, 32>}, {pipeline_mode = #tpu.pipeline_mode<synchronous>, transform_indices = @transform_8, window_bounds = array<i64: 16, 32>}, {pipeline_mode = #tpu.pipeline_mode<synchronous>, transform_indices = @transform_9, window_bounds = array<i64: 1, 32>}, {pipeline_mode = #tpu.pipeline_mode<synchronous>, transform_indices = @transform_10, window_bounds = array<i64: 32, 16>}, {pipeline_mode = #tpu.pipeline_mode<synchronous>, transform_indices = @transform_11, window_bounds = array<i64: 1, 16>}, {pipeline_mode = #tpu.pipeline_mode<synchronous>, transform_indices = @transform_12, window_bounds = array<i64: 16, 1>}, {transform_indices = @transform_13, window_bounds = array<i64: 1, 8>}]} {
    %c0 = arith.constant 0 : index
    %c0_0 = arith.constant 0 : index
    %0 = vector.load %arg1[%c0, %c0_0] : memref<8x4xf32, #tpu.memory_space<vmem>>, vector<8x4xf32>
    %c0_1 = arith.constant 0 : index
    %c0_2 = arith.constant 0 : index
    %1 = vector.load %arg2[%c0_1, %c0_2] : memref<8x3xi32, #tpu.memory_space<vmem>>, vector<8x3xi32>
    %c0_3 = arith.constant 0 : index
    %c0_4 = arith.constant 0 : index
    %2 = vector.load %arg3[%c0_3, %c0_4] : memref<8x36xi8, #tpu.memory_space<vmem>>, vector<8x36xi8>
    %3 = arith.sitofp %2 : vector<8x36xi8> to vector<8x36xf32>
    %c0_5 = arith.constant 0 : index
    %c0_6 = arith.constant 0 : index
    %4 = vector.load %arg4[%c0_5, %c0_6] : memref<1x4xf32, #tpu.memory_space<vmem>>, vector<1x4xf32>
    %5 = vector.broadcast %4 : vector<1x4xf32> to vector<8x4xf32>
    %6 = arith.mulf %0, %5 : vector<8x4xf32>
    %cst = arith.constant dense<0.000000e+00> : vector<8xf32>
    %7 = vector.multi_reduction <add>, %6, %cst [1] : vector<8x4xf32> to vector<8xf32>
    %8 = vector.shape_cast %7 : vector<8xf32> to vector<8x1xf32>
    %c0_7 = arith.constant 0 : index
    %c0_8 = arith.constant 0 : index
    %9 = vector.load %arg5[%c0_7, %c0_8] : memref<1x36xf32, #tpu.memory_space<vmem>>, vector<1x36xf32>
    %10 = vector.broadcast %9 : vector<1x36xf32> to vector<8x36xf32>
    %11 = arith.mulf %3, %10 : vector<8x36xf32>
    %cst_9 = arith.constant dense<0.000000e+00> : vector<8xf32>
    %12 = vector.multi_reduction <add>, %11, %cst_9 [1] : vector<8x36xf32> to vector<8xf32>
    %13 = vector.shape_cast %12 : vector<8xf32> to vector<8x1xf32>
    %14 = arith.addf %8, %13 : vector<8x1xf32>
    %c0_10 = arith.constant 0 : index
    %c0_11 = arith.constant 0 : index
    %15 = vector.load %arg10[%c0_10, %c0_11] : memref<1x32xf32, #tpu.memory_space<vmem>>, vector<1x32xf32>
    %16 = vector.extract_strided_slice %1 {offsets = [0, 0], sizes = [8, 1], strides = [1, 1]} : vector<8x3xi32> to vector<8x1xi32>
    %17 = tpu.iota {dimensions = array<i32: 1>} : vector<8x8xi32>
    %18 = vector.broadcast %16 : vector<8x1xi32> to vector<8x8xi32>
    %19 = arith.cmpi eq, %18, %17 : vector<8x8xi32>
    %20 = arith.extui %19 : vector<8x8xi1> to vector<8x8xi32>
    %21 = arith.sitofp %20 : vector<8x8xi32> to vector<8x8xf32>
    %c0_12 = arith.constant 0 : index
    %c0_13 = arith.constant 0 : index
    %22 = vector.load %arg7[%c0_12, %c0_13] : memref<8x32xf32, #tpu.memory_space<vmem>>, vector<8x32xf32>
    %cst_14 = arith.constant dense<0.000000e+00> : vector<8x32xf32>
    %23 = tpu.matmul %21, %22, %cst_14 {dimension_numbers = #tpu.dot_dimension_numbers<[1], [0], [0], [1], [0, 0, 1, 1], [], []>} : vector<8x8xf32>, vector<8x32xf32>, vector<8x32xf32> -> vector<8x32xf32>
    %24 = vector.broadcast %15 : vector<1x32xf32> to vector<8x32xf32>
    %25 = arith.addf %24, %23 : vector<8x32xf32>
    %26 = vector.extract_strided_slice %1 {offsets = [0, 1], sizes = [8, 1], strides = [1, 1]} : vector<8x3xi32> to vector<8x1xi32>
    %27 = tpu.iota {dimensions = array<i32: 1>} : vector<8x12xi32>
    %28 = vector.broadcast %26 : vector<8x1xi32> to vector<8x12xi32>
    %29 = arith.cmpi eq, %28, %27 : vector<8x12xi32>
    %30 = arith.extui %29 : vector<8x12xi1> to vector<8x12xi32>
    %31 = arith.sitofp %30 : vector<8x12xi32> to vector<8x12xf32>
    %c0_15 = arith.constant 0 : index
    %c0_16 = arith.constant 0 : index
    %32 = vector.load %arg8[%c0_15, %c0_16] : memref<12x32xf32, #tpu.memory_space<vmem>>, vector<12x32xf32>
    %cst_17 = arith.constant dense<0.000000e+00> : vector<8x32xf32>
    %33 = tpu.matmul %31, %32, %cst_17 {dimension_numbers = #tpu.dot_dimension_numbers<[1], [0], [0], [1], [0, 0, 1, 1], [], []>} : vector<8x12xf32>, vector<12x32xf32>, vector<8x32xf32> -> vector<8x32xf32>
    %34 = arith.addf %25, %33 : vector<8x32xf32>
    %35 = vector.extract_strided_slice %1 {offsets = [0, 2], sizes = [8, 1], strides = [1, 1]} : vector<8x3xi32> to vector<8x1xi32>
    %36 = tpu.iota {dimensions = array<i32: 1>} : vector<8x16xi32>
    %37 = vector.broadcast %35 : vector<8x1xi32> to vector<8x16xi32>
    %38 = arith.cmpi eq, %37, %36 : vector<8x16xi32>
    %39 = arith.extui %38 : vector<8x16xi1> to vector<8x16xi32>
    %40 = arith.sitofp %39 : vector<8x16xi32> to vector<8x16xf32>
    %c0_18 = arith.constant 0 : index
    %c0_19 = arith.constant 0 : index
    %41 = vector.load %arg9[%c0_18, %c0_19] : memref<16x32xf32, #tpu.memory_space<vmem>>, vector<16x32xf32>
    %cst_20 = arith.constant dense<0.000000e+00> : vector<8x32xf32>
    %42 = tpu.matmul %40, %41, %cst_20 {dimension_numbers = #tpu.dot_dimension_numbers<[1], [0], [0], [1], [0, 0, 1, 1], [], []>} : vector<8x16xf32>, vector<16x32xf32>, vector<8x32xf32> -> vector<8x32xf32>
    %43 = arith.addf %34, %42 : vector<8x32xf32>
    %cst_21 = arith.constant 0.000000e+00 : f32
    %44 = vector.broadcast %cst_21 : f32 to vector<8x32xf32>
    %45 = arith.maximumf %43, %44 : vector<8x32xf32>
    %c0_22 = arith.constant 0 : index
    %c0_23 = arith.constant 0 : index
    %46 = vector.load %arg11[%c0_22, %c0_23] : memref<32x16xf32, #tpu.memory_space<vmem>>, vector<32x16xf32>
    %cst_24 = arith.constant dense<0.000000e+00> : vector<8x16xf32>
    %47 = tpu.matmul %45, %46, %cst_24 {dimension_numbers = #tpu.dot_dimension_numbers<[1], [0], [0], [1], [0, 0, 1, 1], [], []>} : vector<8x32xf32>, vector<32x16xf32>, vector<8x16xf32> -> vector<8x16xf32>
    %c0_25 = arith.constant 0 : index
    %c0_26 = arith.constant 0 : index
    %48 = vector.load %arg12[%c0_25, %c0_26] : memref<1x16xf32, #tpu.memory_space<vmem>>, vector<1x16xf32>
    %49 = vector.broadcast %48 : vector<1x16xf32> to vector<8x16xf32>
    %50 = arith.addf %47, %49 : vector<8x16xf32>
    %cst_27 = arith.constant 0.000000e+00 : f32
    %51 = vector.broadcast %cst_27 : f32 to vector<8x16xf32>
    %52 = arith.maximumf %50, %51 : vector<8x16xf32>
    %c0_28 = arith.constant 0 : index
    %c0_29 = arith.constant 0 : index
    %53 = vector.load %arg13[%c0_28, %c0_29] : memref<16x1xf32, #tpu.memory_space<vmem>>, vector<16x1xf32>
    %cst_30 = arith.constant dense<0.000000e+00> : vector<8x1xf32>
    %54 = tpu.matmul %52, %53, %cst_30 {dimension_numbers = #tpu.dot_dimension_numbers<[1], [0], [0], [1], [0, 0, 1, 1], [], []>} : vector<8x16xf32>, vector<16x1xf32>, vector<8x1xf32> -> vector<8x1xf32>
    %55 = arith.addf %14, %54 : vector<8x1xf32>
    %c0_31 = arith.constant 0 : index
    %c0_32 = arith.constant 0 : index
    %56 = vector.load %arg6[%c0_31, %c0_32] : memref<1x1xf32, #tpu.memory_space<vmem>>, vector<1x1xf32>
    %57 = vector.broadcast %56 : vector<1x1xf32> to vector<8x1xf32>
    %58 = arith.addf %55, %57 : vector<8x1xf32>
    %cst_33 = arith.constant 5.000000e-01 : f32
    %59 = vector.broadcast %cst_33 : f32 to vector<8x1xf32>
    %60 = arith.mulf %59, %58 : vector<8x1xf32>
    %61 = arith.negf %60 : vector<8x1xf32>
    %62 = math.exp %61 : vector<8x1xf32>
    %cst_34 = arith.constant 1.000000e+00 : f32
    %63 = vector.broadcast %cst_34 : f32 to vector<8x1xf32>
    %64 = arith.addf %63, %62 : vector<8x1xf32>
    %65 = arith.divf %63, %64 : vector<8x1xf32>
    %66 = tpu.transpose %65, [1, 0] : vector<8x1xf32> -> vector<1x8xf32>
    %c0_35 = arith.constant 0 : index
    %c0_36 = arith.constant 0 : index
    %67 = vector.load %arg14[%c0_35, %c0_36] : memref<1x8xf32, #tpu.memory_space<vmem>>, vector<1x8xf32>
    tpu.vector_store %arg14[%c0_35, %c0_36], %66 {strides = array<i32>} : memref<1x8xf32, #tpu.memory_space<vmem>>, vector<1x8xf32>,
    return
  }
  func.func @transform_0(%arg0: i32) -> (i32, i32) {
    %c0_i32 = arith.constant 0 : i32
    %c0_i32_0 = arith.constant 0 : i32
    return %arg0, %c0_i32 : i32, i32
  }
  func.func @transform_1(%arg0: i32) -> (i32, i32) {
    %c0_i32 = arith.constant 0 : i32
    %c0_i32_0 = arith.constant 0 : i32
    return %arg0, %c0_i32 : i32, i32
  }
  func.func @transform_2(%arg0: i32) -> (i32, i32) {
    %c0_i32 = arith.constant 0 : i32
    %c0_i32_0 = arith.constant 0 : i32
    return %arg0, %c0_i32 : i32, i32
  }
  func.func @transform_3(%arg0: i32) -> (i32, i32) {
    %c0_i32 = arith.constant 0 : i32
    %c0_i32_0 = arith.constant 0 : i32
    %c0_i32_1 = arith.constant 0 : i32
    return %c0_i32, %c0_i32_0 : i32, i32
  }
  func.func @transform_4(%arg0: i32) -> (i32, i32) {
    %c0_i32 = arith.constant 0 : i32
    %c0_i32_0 = arith.constant 0 : i32
    %c0_i32_1 = arith.constant 0 : i32
    return %c0_i32, %c0_i32_0 : i32, i32
  }
  func.func @transform_5(%arg0: i32) -> (i32, i32) {
    %c0_i32 = arith.constant 0 : i32
    %c0_i32_0 = arith.constant 0 : i32
    %c0_i32_1 = arith.constant 0 : i32
    return %c0_i32, %c0_i32_0 : i32, i32
  }
  func.func @transform_6(%arg0: i32) -> (i32, i32) {
    %c0_i32 = arith.constant 0 : i32
    %c0_i32_0 = arith.constant 0 : i32
    %c0_i32_1 = arith.constant 0 : i32
    return %c0_i32, %c0_i32_0 : i32, i32
  }
  func.func @transform_7(%arg0: i32) -> (i32, i32) {
    %c0_i32 = arith.constant 0 : i32
    %c0_i32_0 = arith.constant 0 : i32
    %c0_i32_1 = arith.constant 0 : i32
    return %c0_i32, %c0_i32_0 : i32, i32
  }
  func.func @transform_8(%arg0: i32) -> (i32, i32) {
    %c0_i32 = arith.constant 0 : i32
    %c0_i32_0 = arith.constant 0 : i32
    %c0_i32_1 = arith.constant 0 : i32
    return %c0_i32, %c0_i32_0 : i32, i32
  }
  func.func @transform_9(%arg0: i32) -> (i32, i32) {
    %c0_i32 = arith.constant 0 : i32
    %c0_i32_0 = arith.constant 0 : i32
    %c0_i32_1 = arith.constant 0 : i32
    return %c0_i32, %c0_i32_0 : i32, i32
  }
  func.func @transform_10(%arg0: i32) -> (i32, i32) {
    %c0_i32 = arith.constant 0 : i32
    %c0_i32_0 = arith.constant 0 : i32
    %c0_i32_1 = arith.constant 0 : i32
    return %c0_i32, %c0_i32_0 : i32, i32
  }
  func.func @transform_11(%arg0: i32) -> (i32, i32) {
    %c0_i32 = arith.constant 0 : i32
    %c0_i32_0 = arith.constant 0 : i32
    %c0_i32_1 = arith.constant 0 : i32
    return %c0_i32, %c0_i32_0 : i32, i32
  }
  func.func @transform_12(%arg0: i32) -> (i32, i32) {
    %c0_i32 = arith.constant 0 : i32
    %c0_i32_0 = arith.constant 0 : i32
    %c0_i32_1 = arith.constant 0 : i32
    return %c0_i32, %c0_i32_0 : i32, i32
  }
  func.func @transform_13(%arg0: i32) -> (i32, i32) {
    %c0_i32 = arith.constant 0 : i32
    %c0_i32_0 = arith.constant 0 : i32
    return %c0_i32, %arg0 : i32, i32
  }
}

module attributes {stable_mosaic.version = 11 : i64} {
  func.func @kernel(%arg0: i32, %arg1: memref<8x4xf32, #tpu.memory_space<vmem>>, %arg2: memref<8x3xi32, #tpu.memory_space<vmem>>, %arg3: memref<8x36xi8, #tpu.memory_space<vmem>>, %arg4: memref<1x4xf32, #tpu.memory_space<vmem>>, %arg5: memref<1x36xf32, #tpu.memory_space<vmem>>, %arg6: memref<1x1xf32, #tpu.memory_space<vmem>>, %arg7: memref<8x32xf32, #tpu.memory_space<vmem>>, %arg8: memref<12x32xf32, #tpu.memory_space<vmem>>, %arg9: memref<16x32xf32, #tpu.memory_space<vmem>>, %arg10: memref<1x32xf32, #tpu.memory_space<vmem>>, %arg11: memref<32x16xf32, #tpu.memory_space<vmem>>, %arg12: memref<1x16xf32, #tpu.memory_space<vmem>>, %arg13: memref<16x1xf32, #tpu.memory_space<vmem>>, %arg14: memref<1x8xf32, #tpu.memory_space<vmem>>) attributes {dimension_semantics = [#tpu.dimension_semantics<parallel>], iteration_bounds = array<i64: 1>, scalar_prefetch = 0 : i64, scratch_operands = 0 : i64, tpu.core_type = #tpu.core_type<tc>, window_params = [{transform_indices = @transform_0, window_bounds = array<i64: 8, 4>}, {transform_indices = @transform_1, window_bounds = array<i64: 8, 3>}, {transform_indices = @transform_2, window_bounds = array<i64: 8, 36>}, {pipeline_mode = #tpu.pipeline_mode<synchronous>, transform_indices = @transform_3, window_bounds = array<i64: 1, 4>}, {pipeline_mode = #tpu.pipeline_mode<synchronous>, transform_indices = @transform_4, window_bounds = array<i64: 1, 36>}, {pipeline_mode = #tpu.pipeline_mode<synchronous>, transform_indices = @transform_5, window_bounds = array<i64: 1, 1>}, {pipeline_mode = #tpu.pipeline_mode<synchronous>, transform_indices = @transform_6, window_bounds = array<i64: 8, 32>}, {pipeline_mode = #tpu.pipeline_mode<synchronous>, transform_indices = @transform_7, window_bounds = array<i64: 12, 32>}, {pipeline_mode = #tpu.pipeline_mode<synchronous>, transform_indices = @transform_8, window_bounds = array<i64: 16, 32>}, {pipeline_mode = #tpu.pipeline_mode<synchronous>, transform_indices = @transform_9, window_bounds = array<i64: 1, 32>}, {pipeline_mode = #tpu.pipeline_mode<synchronous>, transform_indices = @transform_10, window_bounds = array<i64: 32, 16>}, {pipeline_mode = #tpu.pipeline_mode<synchronous>, transform_indices = @transform_11, window_bounds = array<i64: 1, 16>}, {pipeline_mode = #tpu.pipeline_mode<synchronous>, transform_indices = @transform_12, window_bounds = array<i64: 16, 1>}, {transform_indices = @transform_13, window_bounds = array<i64: 1, 8>}]} {
    %c0 = arith.constant 0 : index
    %c0_0 = arith.constant 0 : index
    %0 = vector.load %arg1[%c0, %c0_0] : memref<8x4xf32, #tpu.memory_space<vmem>>, vector<8x4xf32>
    %c0_1 = arith.constant 0 : index
    %c0_2 = arith.constant 0 : index
    %1 = vector.load %arg2[%c0_1, %c0_2] : memref<8x3xi32, #tpu.memory_space<vmem>>, vector<8x3xi32>
    %c0_3 = arith.constant 0 : index
    %c0_4 = arith.constant 0 : index
    %2 = vector.load %arg3[%c0_3, %c0_4] : memref<8x36xi8, #tpu.memory_space<vmem>>, vector<8x36xi8>
    %3 = arith.sitofp %2 : vector<8x36xi8> to vector<8x36xf32>
    %c0_5 = arith.constant 0 : index
    %c0_6 = arith.constant 0 : index
    %4 = vector.load %arg4[%c0_5, %c0_6] : memref<1x4xf32, #tpu.memory_space<vmem>>, vector<1x4xf32>
    %5 = vector.broadcast %4 : vector<1x4xf32> to vector<8x4xf32>
    %6 = arith.mulf %0, %5 : vector<8x4xf32>
    %cst = arith.constant dense<0.000000e+00> : vector<8xf32>
    %7 = vector.multi_reduction <add>, %6, %cst [1] : vector<8x4xf32> to vector<8xf32>
    %8 = vector.shape_cast %7 : vector<8xf32> to vector<8x1xf32>
    %c0_7 = arith.constant 0 : index
    %c0_8 = arith.constant 0 : index
    %9 = vector.load %arg5[%c0_7, %c0_8] : memref<1x36xf32, #tpu.memory_space<vmem>>, vector<1x36xf32>
    %10 = vector.broadcast %9 : vector<1x36xf32> to vector<8x36xf32>
    %11 = arith.mulf %3, %10 : vector<8x36xf32>
    %cst_9 = arith.constant dense<0.000000e+00> : vector<8xf32>
    %12 = vector.multi_reduction <add>, %11, %cst_9 [1] : vector<8x36xf32> to vector<8xf32>
    %13 = vector.shape_cast %12 : vector<8xf32> to vector<8x1xf32>
    %14 = arith.addf %8, %13 : vector<8x1xf32>
    %c0_10 = arith.constant 0 : index
    %c0_11 = arith.constant 0 : index
    %15 = vector.load %arg10[%c0_10, %c0_11] : memref<1x32xf32, #tpu.memory_space<vmem>>, vector<1x32xf32>
    %16 = vector.extract_strided_slice %1 {offsets = [0, 0], sizes = [8, 1], strides = [1, 1]} : vector<8x3xi32> to vector<8x1xi32>
    %17 = tpu.iota {dimensions = array<i32: 1>} : vector<8x8xi32>
    %18 = vector.broadcast %16 : vector<8x1xi32> to vector<8x8xi32>
    %19 = arith.cmpi eq, %18, %17 : vector<8x8xi32>
    %20 = arith.extui %19 : vector<8x8xi1> to vector<8x8xi32>
    %21 = arith.sitofp %20 : vector<8x8xi32> to vector<8x8xf32>
    %c0_12 = arith.constant 0 : index
    %c0_13 = arith.constant 0 : index
    %22 = vector.load %arg7[%c0_12, %c0_13] : memref<8x32xf32, #tpu.memory_space<vmem>>, vector<8x32xf32>
    %cst_14 = arith.constant dense<0.000000e+00> : vector<8x32xf32>
    %23 = tpu.matmul %21, %22, %cst_14 {dimension_numbers = #tpu.dot_dimension_numbers<[1], [0], [0], [1], [0, 0, 1, 1], [], []>} : vector<8x8xf32>, vector<8x32xf32>, vector<8x32xf32> -> vector<8x32xf32>
    %24 = vector.broadcast %15 : vector<1x32xf32> to vector<8x32xf32>
    %25 = arith.addf %24, %23 : vector<8x32xf32>
    %26 = vector.extract_strided_slice %1 {offsets = [0, 1], sizes = [8, 1], strides = [1, 1]} : vector<8x3xi32> to vector<8x1xi32>
    %27 = tpu.iota {dimensions = array<i32: 1>} : vector<8x12xi32>
    %28 = vector.broadcast %26 : vector<8x1xi32> to vector<8x12xi32>
    %29 = arith.cmpi eq, %28, %27 : vector<8x12xi32>
    %30 = arith.extui %29 : vector<8x12xi1> to vector<8x12xi32>
    %31 = arith.sitofp %30 : vector<8x12xi32> to vector<8x12xf32>
    %c0_15 = arith.constant 0 : index
    %c0_16 = arith.constant 0 : index
    %32 = vector.load %arg8[%c0_15, %c0_16] : memref<12x32xf32, #tpu.memory_space<vmem>>, vector<12x32xf32>
    %cst_17 = arith.constant dense<0.000000e+00> : vector<8x32xf32>
    %33 = tpu.matmul %31, %32, %cst_17 {dimension_numbers = #tpu.dot_dimension_numbers<[1], [0], [0], [1], [0, 0, 1, 1], [], []>} : vector<8x12xf32>, vector<12x32xf32>, vector<8x32xf32> -> vector<8x32xf32>
    %34 = arith.addf %25, %33 : vector<8x32xf32>
    %35 = vector.extract_strided_slice %1 {offsets = [0, 2], sizes = [8, 1], strides = [1, 1]} : vector<8x3xi32> to vector<8x1xi32>
    %36 = tpu.iota {dimensions = array<i32: 1>} : vector<8x16xi32>
    %37 = vector.broadcast %35 : vector<8x1xi32> to vector<8x16xi32>
    %38 = arith.cmpi eq, %37, %36 : vector<8x16xi32>
    %39 = arith.extui %38 : vector<8x16xi1> to vector<8x16xi32>
    %40 = arith.sitofp %39 : vector<8x16xi32> to vector<8x16xf32>
    %c0_18 = arith.constant 0 : index
    %c0_19 = arith.constant 0 : index
    %41 = vector.load %arg9[%c0_18, %c0_19] : memref<16x32xf32, #tpu.memory_space<vmem>>, vector<16x32xf32>
    %cst_20 = arith.constant dense<0.000000e+00> : vector<8x32xf32>
    %42 = tpu.matmul %40, %41, %cst_20 {dimension_numbers = #tpu.dot_dimension_numbers<[1], [0], [0], [1], [0, 0, 1, 1], [], []>} : vector<8x16xf32>, vector<16x32xf32>, vector<8x32xf32> -> vector<8x32xf32>
    %43 = arith.addf %34, %42 : vector<8x32xf32>
    %cst_21 = arith.constant 0.000000e+00 : f32
    %44 = vector.broadcast %cst_21 : f32 to vector<8x32xf32>
    %45 = arith.maximumf %43, %44 : vector<8x32xf32>
    %c0_22 = arith.constant 0 : index
    %c0_23 = arith.constant 0 : index
    %46 = vector.load %arg11[%c0_22, %c0_23] : memref<32x16xf32, #tpu.memory_space<vmem>>, vector<32x16xf32>
    %cst_24 = arith.constant dense<0.000000e+00> : vector<8x16xf32>
    %47 = tpu.matmul %45, %46, %cst_24 {dimension_numbers = #tpu.dot_dimension_numbers<[1], [0], [0], [1], [0, 0, 1, 1], [], []>} : vector<8x32xf32>, vector<32x16xf32>, vector<8x16xf32> -> vector<8x16xf32>
    %c0_25 = arith.constant 0 : index
    %c0_26 = arith.constant 0 : index
    %48 = vector.load %arg12[%c0_25, %c0_26] : memref<1x16xf32, #tpu.memory_space<vmem>>, vector<1x16xf32>
    %49 = vector.broadcast %48 : vector<1x16xf32> to vector<8x16xf32>
    %50 = arith.addf %47, %49 : vector<8x16xf32>
    %cst_27 = arith.constant 0.000000e+00 : f32
    %51 = vector.broadcast %cst_27 : f32 to vector<8x16xf32>
    %52 = arith.maximumf %50, %51 : vector<8x16xf32>
    %c0_28 = arith.constant 0 : index
    %c0_29 = arith.constant 0 : index
    %53 = vector.load %arg13[%c0_28, %c0_29] : memref<16x1xf32, #tpu.memory_space<vmem>>, vector<16x1xf32>
    %cst_30 = arith.constant dense<0.000000e+00> : vector<8x1xf32>
    %54 = tpu.matmul %52, %53, %cst_30 {dimension_numbers = #tpu.dot_dimension_numbers<[1], [0], [0], [1], [0, 0, 1, 1], [], []>} : vector<8x16xf32>, vector<16x1xf32>, vector<8x1xf32> -> vector<8x1xf32>
    %55 = arith.addf %14, %54 : vector<8x1xf32>
    %c0_31 = arith.constant 0 : index
    %c0_32 = arith.constant 0 : index
    %56 = vector.load %arg6[%c0_31, %c0_32] : memref<1x1xf32, #tpu.memory_space<vmem>>, vector<1x1xf32>
    %57 = vector.broadcast %56 : vector<1x1xf32> to vector<8x1xf32>
    %58 = arith.addf %55, %57 : vector<8x1xf32>
    %cst_33 = arith.constant 5.000000e-01 : f32
    %59 = vector.broadcast %cst_33 : f32 to vector<8x1xf32>
    %60 = arith.mulf %59, %58 : vector<8x1xf32>
    %61 = arith.negf %60 : vector<8x1xf32>
    %62 = math.exp %61 : vector<8x1xf32>
    %cst_34 = arith.constant 1.000000e+00 : f32
    %63 = vector.broadcast %cst_34 : f32 to vector<8x1xf32>
    %64 = arith.addf %63, %62 : vector<8x1xf32>
    %65 = arith.divf %63, %64 : vector<8x1xf32>
    %66 = tpu.transpose %65, [1, 0] : vector<8x1xf32> -> vector<1x8xf32>
    %c0_35 = arith.constant 0 : index
    %c0_36 = arith.constant 0 : index
    %67 = vector.load %arg14[%c0_35, %c0_36] : memref<1x8xf32, #tpu.memory_space<vmem>>, vector<1x8xf32>
    tpu.vector_store %arg14[%c0_35, %c0_36], %66 {strides = array<i32>} : memref<1x8xf32, #tpu.memory_space<vmem>>, vector<1x8xf32>,
    return
  }
  func.func @transform_0(%arg0: i32) -> (i32, i32) {
    %c0_i32 = arith.constant 0 : i32
    %c0_i32_0 = arith.constant 0 : i32
    return %arg0, %c0_i32 : i32, i32
  }
  func.func @transform_1(%arg0: i32) -> (i32, i32) {
    %c0_i32 = arith.constant 0 : i32
    %c0_i32_0 = arith.constant 0 : i32
    return %arg0, %c0_i32 : i32, i32
  }
  func.func @transform_2(%arg0: i32) -> (i32, i32) {
    %c0_i32 = arith.constant 0 : i32
    %c0_i32_0 = arith.constant 0 : i32
    return %arg0, %c0_i32 : i32, i32
  }
  func.func @transform_3(%arg0: i32) -> (i32, i32) {
    %c0_i32 = arith.constant 0 : i32
    %c0_i32_0 = arith.constant 0 : i32
    %c0_i32_1 = arith.constant 0 : i32
    return %c0_i32, %c0_i32_0 : i32, i32
  }
  func.func @transform_4(%arg0: i32) -> (i32, i32) {
    %c0_i32 = arith.constant 0 : i32
    %c0_i32_0 = arith.constant 0 : i32
    %c0_i32_1 = arith.constant 0 : i32
    return %c0_i32, %c0_i32_0 : i32, i32
  }
  func.func @transform_5(%arg0: i32) -> (i32, i32) {
    %c0_i32 = arith.constant 0 : i32
    %c0_i32_0 = arith.constant 0 : i32
    %c0_i32_1 = arith.constant 0 : i32
    return %c0_i32, %c0_i32_0 : i32, i32
  }
  func.func @transform_6(%arg0: i32) -> (i32, i32) {
    %c0_i32 = arith.constant 0 : i32
    %c0_i32_0 = arith.constant 0 : i32
    %c0_i32_1 = arith.constant 0 : i32
    return %c0_i32, %c0_i32_0 : i32, i32
  }
  func.func @transform_7(%arg0: i32) -> (i32, i32) {
    %c0_i32 = arith.constant 0 : i32
    %c0_i32_0 = arith.constant 0 : i32
    %c0_i32_1 = arith.constant 0 : i32
    return %c0_i32, %c0_i32_0 : i32, i32
  }
  func.func @transform_8(%arg0: i32) -> (i32, i32) {
    %c0_i32 = arith.constant 0 : i32
    %c0_i32_0 = arith.constant 0 : i32
    %c0_i32_1 = arith.constant 0 : i32
    return %c0_i32, %c0_i32_0 : i32, i32
  }
  func.func @transform_9(%arg0: i32) -> (i32, i32) {
    %c0_i32 = arith.constant 0 : i32
    %c0_i32_0 = arith.constant 0 : i32
    %c0_i32_1 = arith.constant 0 : i32
    return %c0_i32, %c0_i32_0 : i32, i32
  }
  func.func @transform_10(%arg0: i32) -> (i32, i32) {
    %c0_i32 = arith.constant 0 : i32
    %c0_i32_0 = arith.constant 0 : i32
    %c0_i32_1 = arith.constant 0 : i32
    return %c0_i32, %c0_i32_0 : i32, i32
  }
  func.func @transform_11(%arg0: i32) -> (i32, i32) {
    %c0_i32 = arith.constant 0 : i32
    %c0_i32_0 = arith.constant 0 : i32
    %c0_i32_1 = arith.constant 0 : i32
    return %c0_i32, %c0_i32_0 : i32, i32
  }
  func.func @transform_12(%arg0: i32) -> (i32, i32) {
    %c0_i32 = arith.constant 0 : i32
    %c0_i32_0 = arith.constant 0 : i32
    %c0_i32_1 = arith.constant 0 : i32
    return %c0_i32, %c0_i32_0 : i32, i32
  }
  func.func @transform_13(%arg0: i32) -> (i32, i32) {
    %c0_i32 = arith.constant 0 : i32
    %c0_i32_0 = arith.constant 0 : i32
    return %c0_i32, %arg0 : i32, i32
  }
}

</mosaic_0001>

<llo_original>
// kernel: tpu_custom_call.1
$region0: #{tpu_custom_call.1}
  #allocation0 [shape = 'u32[]', space=smem, size = 0x4, offset = 0x4, fixed_abs, tag = 'smem constant byte address 0x4 - core index']
  #allocation1 [shape = 'u32[72,128]{1,0:T(1,128)}', space=vmem, size = 0x9000, scoped, tag = 'internal scratch']
  #allocation2 [shape = 'f32[1,1]{1,0:T(1,128)S(1)}', space=vmem, size = 0x200, scoped, tag = 'scoped memory for tpu_custom_call.1']
  %s0 = inlined_call_operand.vmem [shape: f32[8,4], index: 0, kind: input, shape index: {}]
  %s1 = inlined_call_operand.vmem [shape: s32[8,3], index: 1, kind: input, shape index: {}]
  %s2 = inlined_call_operand.vmem [shape: s8[8,36], index: 2, kind: input, shape index: {}]
  %s3 = inlined_call_operand.vmem [shape: f32[1,4], index: 3, kind: input, shape index: {}]
  %s4 = inlined_call_operand.vmem [shape: f32[1,36], index: 4, kind: input, shape index: {}]
  %s5 = inlined_call_operand.<no memory space> [shape: f32[1,1], index: 5, kind: input, shape index: {}]
  %s6 = inlined_call_operand.vmem [shape: f32[8,32], index: 6, kind: input, shape index: {}]
  %s7 = inlined_call_operand.vmem [shape: f32[12,32], index: 7, kind: input, shape index: {}]
  %s8 = inlined_call_operand.vmem [shape: f32[16,32], index: 8, kind: input, shape index: {}]
  %s9 = inlined_call_operand.vmem [shape: f32[1,32], index: 9, kind: input, shape index: {}]
  %s10 = inlined_call_operand.vmem [shape: f32[32,16], index: 10, kind: input, shape index: {}]
  %s11 = inlined_call_operand.vmem [shape: f32[1,16], index: 11, kind: input, shape index: {}]
  %s12 = inlined_call_operand.vmem [shape: f32[16,1], index: 12, kind: input, shape index: {}]
  %s13 = inlined_call_operand.hbm [shape: f32[1,8], index: 13, kind: output, shape index: {}]
  %s14 = sld [smem:[#allocation0]]
  $region62: #{tpu_custom_call.1} parent=0
    _
  %s16 = ssub.s32 1, %s14
  %s17 = scalar_select 0, %s16, %s14
  %v18 = vstv %s5
  %19 = vst [vmem:[#allocation2] sm:$0x1] %v18
  $region1: #{tpu_custom_call.1} parent=0
    #allocation3 [shape = 'u8[512]{0}', space=vmem, size = 0x400, scoped, tag = 'output window, operand 0, single buffered']
    #allocation4 [shape = 's32[1]{0}', space=sflag, size = 0x4, scoped, tag = 'scoped memory for tpu_custom_call.1']
    %20 = vsyncpa [#allocation4], 0
    // Predicated region
    $region2: #{tpu_custom_call.1} parent=1 // pred_check
      _
    $region3: #{tpu_custom_call.1} parent=1 // pred_check_branch
      %22 = sbr.rel (0) target = $region5
    $region4: #{tpu_custom_call.1} parent=1 // pred_region
      _
    $region5: #{tpu_custom_call.1} parent=1 // pred_fallthru
      _
    // Predicated region
    $region6: #{tpu_custom_call.1} parent=1 // pred_check
      _
    $region7: #{tpu_custom_call.1} parent=1 // pred_check_branch
      %24 = sbr.rel (0) target = $region9
    $region8: #{tpu_custom_call.1} parent=1 // pred_region
      _
    $region9: #{tpu_custom_call.1} parent=1 // pred_fallthru
      _
    // Predicated region
    $region10: #{tpu_custom_call.1} parent=1 // pred_check
      _
    $region11: #{tpu_custom_call.1} parent=1 // pred_check_branch
      %26 = sbr.rel (0) target = $region13
    $region12: #{tpu_custom_call.1} parent=1 // pred_region
      _
    $region13: #{tpu_custom_call.1} parent=1 // pred_fallthru
      _
    // Predicated region
    $region14: #{tpu_custom_call.1} parent=1 // pred_check
      _
    $region15: #{tpu_custom_call.1} parent=1 // pred_check_branch
      %28 = sbr.rel (0) target = $region17
    $region16: #{tpu_custom_call.1} parent=1 // pred_region
      _
    $region17: #{tpu_custom_call.1} parent=1 // pred_fallthru
      _
    // Predicated region
    $region18: #{tpu_custom_call.1} parent=1 // pred_check
      _
    $region19: #{tpu_custom_call.1} parent=1 // pred_check_branch
      %30 = sbr.rel (0) target = $region21
    $region20: #{tpu_custom_call.1} parent=1 // pred_region
      _
    $region21: #{tpu_custom_call.1} parent=1 // pred_fallthru
      _
    // Predicated region
    $region22: #{tpu_custom_call.1} parent=1 // pred_check
      _
    $region23: #{tpu_custom_call.1} parent=1 // pred_check_branch
      %32 = sbr.rel (0) target = $region25
    $region24: #{tpu_custom_call.1} parent=1 // pred_region
      _
    $region25: #{tpu_custom_call.1} parent=1 // pred_fallthru
      _
    // Predicated region
    $region26: #{tpu_custom_call.1} parent=1 // pred_check
      _
    $region27: #{tpu_custom_call.1} parent=1 // pred_check_branch
      %34 = sbr.rel (0) target = $region29
    $region28: #{tpu_custom_call.1} parent=1 // pred_region
      _
    $region29: #{tpu_custom_call.1} parent=1 // pred_fallthru
      _
    // Predicated region
    $region30: #{tpu_custom_call.1} parent=1 // pred_check
      _
    $region31: #{tpu_custom_call.1} parent=1 // pred_check_branch
      %36 = sbr.rel (0) target = $region33
    $region32: #{tpu_custom_call.1} parent=1 // pred_region
      _
    $region33: #{tpu_custom_call.1} parent=1 // pred_fallthru
      _
    // Predicated region
    $region34: #{tpu_custom_call.1} parent=1 // pred_check
      _
    $region35: #{tpu_custom_call.1} parent=1 // pred_check_branch
      %38 = sbr.rel (0) target = $region37
    $region36: #{tpu_custom_call.1} parent=1 // pred_region
      _
    $region37: #{tpu_custom_call.1} parent=1 // pred_fallthru
      _
    // Predicated region
    $region38: #{tpu_custom_call.1} parent=1 // pred_check
      _
    $region39: #{tpu_custom_call.1} parent=1 // pred_check_branch
      %40 = sbr.rel (0) target = $region41
    $region40: #{tpu_custom_call.1} parent=1 // pred_region
      _
    $region41: #{tpu_custom_call.1} parent=1 // pred_fallthru
      _
    // Predicated region
    $region42: #{tpu_custom_call.1} parent=1 // pred_check
      _
    $region43: #{tpu_custom_call.1} parent=1 // pred_check_branch
      %42 = sbr.rel (0) target = $region45
    $region44: #{tpu_custom_call.1} parent=1 // pred_region
      _
    $region45: #{tpu_custom_call.1} parent=1 // pred_fallthru
      _
    // Predicated region
    $region46: #{tpu_custom_call.1} parent=1 // pred_check
      _
    $region47: #{tpu_custom_call.1} parent=1 // pred_check_branch
      %44 = sbr.rel (0) target = $region49
    $region48: #{tpu_custom_call.1} parent=1 // pred_region
      _
    $region49: #{tpu_custom_call.1} parent=1 // pred_fallthru
      _
    // Predicated region
    $region50: #{tpu_custom_call.1} parent=1 // pred_check
      _
    $region51: #{tpu_custom_call.1} parent=1 // pred_check_branch
      %46 = sbr.rel (0) target = $region53
    $region52: #{tpu_custom_call.1} parent=1 // pred_region
      _
    $region53: #{tpu_custom_call.1} parent=1 // pred_fallthru
      _
    %v47 = vld [vmem:[%s0] sm:$0xff]
    %v48 = vld [vmem:[%s1] sm:$0xff]
    %v49 = vld [vmem:[%s2] sm:$0x3]
    %v50 = vunpack.c.0.s8 %v49
    %v51 = vcvt.s32.f32 %v50
    %v52 = vld [vmem:[%s3] sm:$0x1]
    %v54 = vperm.slane %v52, 0
    %v56 = vmul.f32 %v47, %v54
    %vm57 = vcmask 31744
    %v58 = vsel %vm57, %v56, 0.0
    %59 = vadd.xlane.f32.xlu0 %v58
    %v60 = vpop.xlane.xlu0 %59
    %v61 = vld [vmem:[%s4] sm:$0x1]
    %v63 = vperm.slane %v61, 0
    %v65 = vmul.f32 %v51, %v63
    %vm66 = vcmask 293888
    %v67 = vsel %vm66, %v65, 0.0
    %68 = vadd.xlane.f32.xlu0 %v67
    %v69 = vpop.xlane.xlu0 %68
    %v70 = vadd.f32 %v60, %v69
    %v71 = vld [vmem:[%s9] sm:$0x1]
    %v72 = vlaneseq
    %v73 = vand.u32 %v72, 127
    %74 = vset.pattern.permute.xlu0 0
    %75 = vperm.xlu0 %74, %v48
    %v76 = vpop.permute.xlu0 %75
    %vm77 = vcmp.eq.s32.totalorder %v76, %v73
    %v78 = vsel %vm77, 1, 0
    %v79 = vcvt.s32.f32 %v78
    %v80 = vld [vmem:[%s6] sm:$0xff]
    %vm81 = vcmask 64512
    %v83 = vsel %vm81, %v79, 0
    %85 = vmatpush.msra.mxu0 0.0
    %86 = vmatpush.msra.mxu0 0.0
    %87 = vmatpush.msra.mxu0 0.0
    %88 = vmatpush.msra.mxu0 0.0
    %89 = vmatpush.msra.mxu0 0.0
    %90 = vmatpush.msra.mxu0 0.0
    %91 = vmatpush.msra.mxu0 0.0
    %92 = vmatpush.msra.mxu0 0.0
    %93 = vmatpush.msra.mxu0 0.0
    %94 = vmatpush.msra.mxu0 0.0
    %95 = vmatpush.msra.mxu0 0.0
    %96 = vmatpush.msra.mxu0 0.0
    %97 = vmatpush.msra.mxu0 0.0
    %98 = vmatpush.msra.mxu0 0.0
    %99 = vmatpush.msra.mxu0 0.0
    %100 = vmatpush.msra.mxu0 %v80
    %101 = vmatmul.f32.gmra.mxu0 %v83
    %v102 = vpop.f32.mrf.mxu0
    %v103 = vadd.f32 0.0, %v102
    %104 = vdwg.mxu0
    %v106 = vperm.slane %v71, 0
    %v108 = vadd.f32 %v106, %v103
    %109 = vset.pattern.permute.xlu0 1
    %110 = vperm.xlu0 %109, %v48
    %v111 = vpop.permute.xlu0 %110
    %vm112 = vcmp.eq.s32.totalorder %v111, %v73
    %v113 = vsel %vm112, 1, 0
    %v114 = vcvt.s32.f32 %v113
    %v115 = vld [vmem:[%s7] sm:$0xff]
    %v116 = vld [vmem:[%s7 + $0x8] sm:$0xf]
    %vm117 = vcmask 97280
    %v119 = vsel %vm117, %v114, 0
    %vm121 = vcmask 1043456
    %v123 = vsel %vm121, %v116, 0
    %125 = vmatpush.msra.mxu0 0.0
    %126 = vmatpush.msra.mxu0 0.0
    %127 = vmatpush.msra.mxu0 0.0
    %128 = vmatpush.msra.mxu0 0.0
    %129 = vmatpush.msra.mxu0 0.0
    %130 = vmatpush.msra.mxu0 0.0
    %131 = vmatpush.msra.mxu0 0.0
    %132 = vmatpush.msra.mxu0 0.0
    %133 = vmatpush.msra.mxu0 0.0
    %134 = vmatpush.msra.mxu0 0.0
    %135 = vmatpush.msra.mxu0 0.0
    %136 = vmatpush.msra.mxu0 0.0
    %137 = vmatpush.msra.mxu0 0.0
    %138 = vmatpush.msra.mxu0 0.0
    %139 = vmatpush.msra.mxu0 %v123
    %140 = vmatpush.msra.mxu0 %v115
    %141 = vmatmul.f32.gmra.mxu0 %v119
    %v142 = vpop.f32.mrf.mxu0
    %v143 = vadd.f32 0.0, %v142
    %144 = vdwg.mxu0
    %v145 = vadd.f32 %v108, %v143
    %146 = vset.pattern.permute.xlu0 2
    %147 = vperm.xlu0 %146, %v48
    %v148 = vpop.permute.xlu0 %147
    %vm149 = vcmp.eq.s32.totalorder %v148, %v73
    %v150 = vsel %vm149, 1, 0
    %v151 = vcvt.s32.f32 %v150
    %v152 = vld [vmem:[%s8] sm:$0xff]
    %v153 = vld [vmem:[%s8 + $0x8] sm:$0xff]
    %vm154 = vcmask 130048
    %v156 = vsel %vm154, %v151, 0
    %158 = vmatpush.msra.mxu0 0.0
    %159 = vmatpush.msra.mxu0 0.0
    %160 = vmatpush.msra.mxu0 0.0
    %161 = vmatpush.msra.mxu0 0.0
    %162 = vmatpush.msra.mxu0 0.0
    %163 = vmatpush.msra.mxu0 0.0
    %164 = vmatpush.msra.mxu0 0.0
    %165 = vmatpush.msra.mxu0 0.0
    %166 = vmatpush.msra.mxu0 0.0
    %167 = vmatpush.msra.mxu0 0.0
    %168 = vmatpush.msra.mxu0 0.0
    %169 = vmatpush.msra.mxu0 0.0
    %170 = vmatpush.msra.mxu0 0.0
    %171 = vmatpush.msra.mxu0 0.0
    %172 = vmatpush.msra.mxu0 %v153
    %173 = vmatpush.msra.mxu0 %v152
    %174 = vmatmul.f32.gmra.mxu0 %v156
    %v175 = vpop.f32.mrf.mxu0
    %v176 = vadd.f32 0.0, %v175
    %177 = vdwg.mxu0
    %v178 = vadd.f32 %v145, %v176
    %v179 = vmax.f32 %v178, 0.0
    %v180 = vld [vmem:[%s10] sm:$0xff]
    %v181 = vld [vmem:[%s10 + $0x8] sm:$0xff]
    %v182 = vld [vmem:[%s10 + $0x10] sm:$0xff]
    %v183 = vld [vmem:[%s10 + $0x18] sm:$0xff]
    %v184 = vld [vmem:[%s11] sm:$0x1]
    %v186 = vperm.slane %v184, 0
    %vm188 = vcmask 261120
    %v190 = vsel %vm188, %v179, 0
    %192 = vmatpush.msra.mxu0 0.0
    %193 = vmatpush.msra.mxu0 0.0
    %194 = vmatpush.msra.mxu0 0.0
    %195 = vmatpush.msra.mxu0 0.0
    %196 = vmatpush.msra.mxu0 0.0
    %197 = vmatpush.msra.mxu0 0.0
    %198 = vmatpush.msra.mxu0 0.0
    %199 = vmatpush.msra.mxu0 0.0
    %200 = vmatpush.msra.mxu0 0.0
    %201 = vmatpush.msra.mxu0 0.0
    %202 = vmatpush.msra.mxu0 0.0
    %203 = vmatpush.msra.mxu0 0.0
    %204 = vmatpush.msra.mxu0 %v183
    %205 = vmatpush.msra.mxu0 %v182
    %206 = vmatpush.msra.mxu0 %v181
    %207 = vmatpush.msra.mxu0 %v180
    %208 = vmatmul.f32.gmra.mxu0 %v190
    %v209 = vpop.f32.mrf.mxu0
    %v210 = vadd.f32 %v186, %v209
    %211 = vdwg.mxu0
    %v212 = vmax.f32 %v210, 0.0
    %v213 = vld [vmem:[%s12] sm:$0xff]
    %v214 = vld [vmem:[%s12 + $0x8] sm:$0xff]
    %v216 = vsel %vm154, %v212, 0
    %218 = vmatpush.msra.mxu0 0.0
    %219 = vmatpush.msra.mxu0 0.0
    %220 = vmatpush.msra.mxu0 0.0
    %221 = vmatpush.msra.mxu0 0.0
    %222 = vmatpush.msra.mxu0 0.0
    %223 = vmatpush.msra.mxu0 0.0
    %224 = vmatpush.msra.mxu0 0.0
    %225 = vmatpush.msra.mxu0 0.0
    %226 = vmatpush.msra.mxu0 0.0
    %227 = vmatpush.msra.mxu0 0.0
    %228 = vmatpush.msra.mxu0 0.0
    %229 = vmatpush.msra.mxu0 0.0
    %230 = vmatpush.msra.mxu0 0.0
    %231 = vmatpush.msra.mxu0 0.0
    %232 = vmatpush.msra.mxu0 %v214
    %233 = vmatpush.msra.mxu0 %v213
    %234 = vmatmul.f32.gmra.mxu0 %v216
    %v235 = vpop.f32.mrf.mxu0
    %v236 = vadd.f32 0.0, %v235
    %237 = vdwg.mxu0
    %v238 = vadd.f32 %v70, %v236
    %v239 = vld [vmem:[#allocation2] sm:$0x1]
    %v241 = vperm.slane %v239, 0
    %v243 = vadd.f32 %v238, %v241
    %v244 = vmul.f32 %v243, 0.5
    %v245 = vxor.u32 %v244, 2147483648
    %v246 = vmul.f32 %v245, 1.442695
    %v247 = vpow.pop %v246
    %v248 = vadd.f32 %v247, 1.0
    %v249 = vrcp.pop %v248
    %v250 = vmul.f32 %v248, %v249
    %v251 = vsub.f32 1.0, %v250
    %v252 = vmul.f32 %v249, %v251
    %v253 = vadd.f32 %v249, %v252
    %vm254 = vweird.f32 %v248
    %vm255 = vweird.f32 %v249
    %vm256 = vmor %vm254, %vm255
    %v257 = vsel %vm256, %v249, %v253
    %v258 = vand.u32 2147483647, %v248
    %vm259 = vcmp.eq.f32.partialorder %v258, 8.507059e+37
    %v260 = vand.u32 %v248, 2147483648
    %v261 = vor.u32 1.1754944e-38, %v260
    %v262 = vsel %vm259, %v261, %v257
    %v263 = vmul.f32 1.0, %v262
    %264 = vxpose.xlu0.b32.start [1/16] %v263, 128
    %265 = vxpose.xlu0.b32.cont [2/16] 0.0, 128
    %266 = vxpose.xlu0.b32.cont [3/16] 0.0, 128
    %267 = vxpose.xlu0.b32.cont [4/16] 0.0, 128
    %268 = vxpose.xlu0.b32.cont [5/16] 0.0, 128
    %269 = vxpose.xlu0.b32.cont [6/16] 0.0, 128
    %270 = vxpose.xlu0.b32.cont [7/16] 0.0, 128
    %271 = vxpose.xlu0.b32.cont [8/16] 0.0, 128
    %272 = vxpose.xlu0.b32.cont [9/16] 0.0, 128
    %273 = vxpose.xlu0.b32.cont [10/16] 0.0, 128
    %274 = vxpose.xlu0.b32.cont [11/16] 0.0, 128
    %275 = vxpose.xlu0.b32.cont [12/16] 0.0, 128
    %276 = vxpose.xlu0.b32.cont [13/16] 0.0, 128
    %277 = vxpose.xlu0.b32.cont [14/16] 0.0, 128
    %278 = vxpose.xlu0.b32.cont [15/16] 0.0, 128
    %279 = vxpose.xlu0.b32.end [16/16] 0.0, 128
    %v280 = vpop.trf.xlu0
    %v281 = vpop.trf.xlu0
    %v282 = vpop.trf.xlu0
    %v283 = vpop.trf.xlu0
    %v284 = vpop.trf.xlu0
    %v285 = vpop.trf.xlu0
    %v286 = vpop.trf.xlu0
    %v287 = vpop.trf.xlu0
    %v288 = vpop.trf.xlu0
    %v289 = vpop.trf.xlu0
    %v290 = vpop.trf.xlu0
    %v291 = vpop.trf.xlu0
    %v292 = vpop.trf.xlu0
    %v293 = vpop.trf.xlu0
    %v294 = vpop.trf.xlu0
    %v295 = vpop.trf.xlu0
    %vm296 = vcmask 57344
    %297 = vst.msk [vmem:[#allocation3] sm:$0x1] %vm296, %v280
    // Predicated region
    $region54: #{tpu_custom_call.1} parent=1 // pred_check
      _
    $region55: #{tpu_custom_call.1} parent=1 // pred_check_branch
      %299 = sbr.rel (0) target = $region57
    $region56: #{tpu_custom_call.1} parent=1 // pred_region
      %301 = vsyncadd [#allocation4], 0
      %s303 = sshll.u32 [#allocation3], 4
      %s304 = int_to_ptr.vmem [resolvable:$true] %s303
      %s305 = sshll.u32 %s13, 4
      %s306 = int_to_ptr.hbm [resolvable:$true] %s305
      %308 = dma.vmem_to_hbm [thread:$0]  %s304, 16, %s306, [#allocation4]
    $region57: #{tpu_custom_call.1} parent=1 // pred_fallthru
      _
    // Predicated region
    $region58: #{tpu_custom_call.1} parent=1 // pred_check
      _
    $region59: #{tpu_custom_call.1} parent=1 // pred_check_branch
      %310 = sbr.rel (0) target = $region61
    $region60: #{tpu_custom_call.1} parent=1 // pred_region
      %312 = dma.done [#allocation4], 16
    $region61: #{tpu_custom_call.1} parent=1 // pred_fallthru
      _
    %313 = vsyncpa [#allocation4], 1

// kernel: tpu_custom_call.1
$region0: #{tpu_custom_call.1}
  #allocation0 [shape = 'u32[]', space=smem, size = 0x4, offset = 0x4, fixed_abs, tag = 'smem constant byte address 0x4 - core index']
  #allocation1 [shape = 'u32[72,128]{1,0:T(1,128)}', space=vmem, size = 0x9000, scoped, tag = 'internal scratch']
  #allocation2 [shape = 'f32[1,1]{1,0:T(1,128)S(1)}', space=vmem, size = 0x200, scoped, tag = 'scoped memory for tpu_custom_call.1']
  %s0 = inlined_call_operand.vmem [shape: f32[8,4], index: 0, kind: input, shape index: {}]
  %s1 = inlined_call_operand.vmem [shape: s32[8,3], index: 1, kind: input, shape index: {}]
  %s2 = inlined_call_operand.vmem [shape: s8[8,36], index: 2, kind: input, shape index: {}]
  %s3 = inlined_call_operand.vmem [shape: f32[1,4], index: 3, kind: input, shape index: {}]
  %s4 = inlined_call_operand.vmem [shape: f32[1,36], index: 4, kind: input, shape index: {}]
  %s5 = inlined_call_operand.<no memory space> [shape: f32[1,1], index: 5, kind: input, shape index: {}]
  %s6 = inlined_call_operand.vmem [shape: f32[8,32], index: 6, kind: input, shape index: {}]
  %s7 = inlined_call_operand.vmem [shape: f32[12,32], index: 7, kind: input, shape index: {}]
  %s8 = inlined_call_operand.vmem [shape: f32[16,32], index: 8, kind: input, shape index: {}]
  %s9 = inlined_call_operand.vmem [shape: f32[1,32], index: 9, kind: input, shape index: {}]
  %s10 = inlined_call_operand.vmem [shape: f32[32,16], index: 10, kind: input, shape index: {}]
  %s11 = inlined_call_operand.vmem [shape: f32[1,16], index: 11, kind: input, shape index: {}]
  %s12 = inlined_call_operand.vmem [shape: f32[16,1], index: 12, kind: input, shape index: {}]
  %s13 = inlined_call_operand.hbm [shape: f32[1,8], index: 13, kind: output, shape index: {}]
  %s14 = sld [smem:[#allocation0]]
  $region62: #{tpu_custom_call.1} parent=0
    _
  %s16 = ssub.s32 1, %s14
  %s17 = scalar_select 0, %s16, %s14
  %v18 = vstv %s5
  %19 = vst [vmem:[#allocation2] sm:$0x1] %v18
  $region1: #{tpu_custom_call.1} parent=0
    #allocation3 [shape = 'u8[512]{0}', space=vmem, size = 0x400, scoped, tag = 'output window, operand 0, single buffered']
    #allocation4 [shape = 's32[1]{0}', space=sflag, size = 0x4, scoped, tag = 'scoped memory for tpu_custom_call.1']
    %20 = vsyncpa [#allocation4], 0
    // Predicated region
    $region2: #{tpu_custom_call.1} parent=1 // pred_check
      _
    $region3: #{tpu_custom_call.1} parent=1 // pred_check_branch
      %22 = sbr.rel (0) target = $region5
    $region4: #{tpu_custom_call.1} parent=1 // pred_region
      _
    $region5: #{tpu_custom_call.1} parent=1 // pred_fallthru
      _
    // Predicated region
    $region6: #{tpu_custom_call.1} parent=1 // pred_check
      _
    $region7: #{tpu_custom_call.1} parent=1 // pred_check_branch
      %24 = sbr.rel (0) target = $region9
    $region8: #{tpu_custom_call.1} parent=1 // pred_region
      _
    $region9: #{tpu_custom_call.1} parent=1 // pred_fallthru
      _
    // Predicated region
    $region10: #{tpu_custom_call.1} parent=1 // pred_check
      _
    $region11: #{tpu_custom_call.1} parent=1 // pred_check_branch
      %26 = sbr.rel (0) target = $region13
    $region12: #{tpu_custom_call.1} parent=1 // pred_region
      _
    $region13: #{tpu_custom_call.1} parent=1 // pred_fallthru
      _
    // Predicated region
    $region14: #{tpu_custom_call.1} parent=1 // pred_check
      _
    $region15: #{tpu_custom_call.1} parent=1 // pred_check_branch
      %28 = sbr.rel (0) target = $region17
    $region16: #{tpu_custom_call.1} parent=1 // pred_region
      _
    $region17: #{tpu_custom_call.1} parent=1 // pred_fallthru
      _
    // Predicated region
    $region18: #{tpu_custom_call.1} parent=1 // pred_check
      _
    $region19: #{tpu_custom_call.1} parent=1 // pred_check_branch
      %30 = sbr.rel (0) target = $region21
    $region20: #{tpu_custom_call.1} parent=1 // pred_region
      _
    $region21: #{tpu_custom_call.1} parent=1 // pred_fallthru
      _
    // Predicated region
    $region22: #{tpu_custom_call.1} parent=1 // pred_check
      _
    $region23: #{tpu_custom_call.1} parent=1 // pred_check_branch
      %32 = sbr.rel (0) target = $region25
    $region24: #{tpu_custom_call.1} parent=1 // pred_region
      _
    $region25: #{tpu_custom_call.1} parent=1 // pred_fallthru
      _
    // Predicated region
    $region26: #{tpu_custom_call.1} parent=1 // pred_check
      _
    $region27: #{tpu_custom_call.1} parent=1 // pred_check_branch
      %34 = sbr.rel (0) target = $region29
    $region28: #{tpu_custom_call.1} parent=1 // pred_region
      _
    $region29: #{tpu_custom_call.1} parent=1 // pred_fallthru
      _
    // Predicated region
    $region30: #{tpu_custom_call.1} parent=1 // pred_check
      _
    $region31: #{tpu_custom_call.1} parent=1 // pred_check_branch
      %36 = sbr.rel (0) target = $region33
    $region32: #{tpu_custom_call.1} parent=1 // pred_region
      _
    $region33: #{tpu_custom_call.1} parent=1 // pred_fallthru
      _
    // Predicated region
    $region34: #{tpu_custom_call.1} parent=1 // pred_check
      _
    $region35: #{tpu_custom_call.1} parent=1 // pred_check_branch
      %38 = sbr.rel (0) target = $region37
    $region36: #{tpu_custom_call.1} parent=1 // pred_region
      _
    $region37: #{tpu_custom_call.1} parent=1 // pred_fallthru
      _
    // Predicated region
    $region38: #{tpu_custom_call.1} parent=1 // pred_check
      _
    $region39: #{tpu_custom_call.1} parent=1 // pred_check_branch
      %40 = sbr.rel (0) target = $region41
    $region40: #{tpu_custom_call.1} parent=1 // pred_region
      _
    $region41: #{tpu_custom_call.1} parent=1 // pred_fallthru
      _
    // Predicated region
    $region42: #{tpu_custom_call.1} parent=1 // pred_check
      _
    $region43: #{tpu_custom_call.1} parent=1 // pred_check_branch
      %42 = sbr.rel (0) target = $region45
    $region44: #{tpu_custom_call.1} parent=1 // pred_region
      _
    $region45: #{tpu_custom_call.1} parent=1 // pred_fallthru
      _
    // Predicated region
    $region46: #{tpu_custom_call.1} parent=1 // pred_check
      _
    $region47: #{tpu_custom_call.1} parent=1 // pred_check_branch
      %44 = sbr.rel (0) target = $region49
    $region48: #{tpu_custom_call.1} parent=1 // pred_region
      _
    $region49: #{tpu_custom_call.1} parent=1 // pred_fallthru
      _
    // Predicated region
    $region50: #{tpu_custom_call.1} parent=1 // pred_check
      _
    $region51: #{tpu_custom_call.1} parent=1 // pred_check_branch
      %46 = sbr.rel (0) target = $region53
    $region52: #{tpu_custom_call.1} parent=1 // pred_region
      _
    $region53: #{tpu_custom_call.1} parent=1 // pred_fallthru
      _
    %v47 = vld [vmem:[%s0] sm:$0xff]
    %v48 = vld [vmem:[%s1] sm:$0xff]
    %v49 = vld [vmem:[%s2] sm:$0x3]
    %v50 = vunpack.c.0.s8 %v49
    %v51 = vcvt.s32.f32 %v50
    %v52 = vld [vmem:[%s3] sm:$0x1]
    %v54 = vperm.slane %v52, 0
    %v56 = vmul.f32 %v47, %v54
    %vm57 = vcmask 31744
    %v58 = vsel %vm57, %v56, 0.0
    %59 = vadd.xlane.f32.xlu0 %v58
    %v60 = vpop.xlane.xlu0 %59
    %v61 = vld [vmem:[%s4] sm:$0x1]
    %v63 = vperm.slane %v61, 0
    %v65 = vmul.f32 %v51, %v63
    %vm66 = vcmask 293888
    %v67 = vsel %vm66, %v65, 0.0
    %68 = vadd.xlane.f32.xlu0 %v67
    %v69 = vpop.xlane.xlu0 %68
    %v70 = vadd.f32 %v60, %v69
    %v71 = vld [vmem:[%s9] sm:$0x1]
    %v72 = vlaneseq
    %v73 = vand.u32 %v72, 127
    %74 = vset.pattern.permute.xlu0 0
    %75 = vperm.xlu0 %74, %v48
    %v76 = vpop.permute.xlu0 %75
    %vm77 = vcmp.eq.s32.totalorder %v76, %v73
    %v78 = vsel %vm77, 1, 0
    %v79 = vcvt.s32.f32 %v78
    %v80 = vld [vmem:[%s6] sm:$0xff]
    %vm81 = vcmask 64512
    %v83 = vsel %vm81, %v79, 0
    %85 = vmatpush.msra.mxu0 0.0
    %86 = vmatpush.msra.mxu0 0.0
    %87 = vmatpush.msra.mxu0 0.0
    %88 = vmatpush.msra.mxu0 0.0
    %89 = vmatpush.msra.mxu0 0.0
    %90 = vmatpush.msra.mxu0 0.0
    %91 = vmatpush.msra.mxu0 0.0
    %92 = vmatpush.msra.mxu0 0.0
    %93 = vmatpush.msra.mxu0 0.0
    %94 = vmatpush.msra.mxu0 0.0
    %95 = vmatpush.msra.mxu0 0.0
    %96 = vmatpush.msra.mxu0 0.0
    %97 = vmatpush.msra.mxu0 0.0
    %98 = vmatpush.msra.mxu0 0.0
    %99 = vmatpush.msra.mxu0 0.0
    %100 = vmatpush.msra.mxu0 %v80
    %101 = vmatmul.f32.gmra.mxu0 %v83
    %v102 = vpop.f32.mrf.mxu0
    %v103 = vadd.f32 0.0, %v102
    %104 = vdwg.mxu0
    %v106 = vperm.slane %v71, 0
    %v108 = vadd.f32 %v106, %v103
    %109 = vset.pattern.permute.xlu0 1
    %110 = vperm.xlu0 %109, %v48
    %v111 = vpop.permute.xlu0 %110
    %vm112 = vcmp.eq.s32.totalorder %v111, %v73
    %v113 = vsel %vm112, 1, 0
    %v114 = vcvt.s32.f32 %v113
    %v115 = vld [vmem:[%s7] sm:$0xff]
    %v116 = vld [vmem:[%s7 + $0x8] sm:$0xf]
    %vm117 = vcmask 97280
    %v119 = vsel %vm117, %v114, 0
    %vm121 = vcmask 1043456
    %v123 = vsel %vm121, %v116, 0
    %125 = vmatpush.msra.mxu0 0.0
    %126 = vmatpush.msra.mxu0 0.0
    %127 = vmatpush.msra.mxu0 0.0
    %128 = vmatpush.msra.mxu0 0.0
    %129 = vmatpush.msra.mxu0 0.0
    %130 = vmatpush.msra.mxu0 0.0
    %131 = vmatpush.msra.mxu0 0.0
    %132 = vmatpush.msra.mxu0 0.0
    %133 = vmatpush.msra.mxu0 0.0
    %134 = vmatpush.msra.mxu0 0.0
    %135 = vmatpush.msra.mxu0 0.0
    %136 = vmatpush.msra.mxu0 0.0
    %137 = vmatpush.msra.mxu0 0.0
    %138 = vmatpush.msra.mxu0 0.0
    %139 = vmatpush.msra.mxu0 %v123
    %140 = vmatpush.msra.mxu0 %v115
    %141 = vmatmul.f32.gmra.mxu0 %v119
    %v142 = vpop.f32.mrf.mxu0
    %v143 = vadd.f32 0.0, %v142
    %144 = vdwg.mxu0
    %v145 = vadd.f32 %v108, %v143
    %146 = vset.pattern.permute.xlu0 2
    %147 = vperm.xlu0 %146, %v48
    %v148 = vpop.permute.xlu0 %147
    %vm149 = vcmp.eq.s32.totalorder %v148, %v73
    %v150 = vsel %vm149, 1, 0
    %v151 = vcvt.s32.f32 %v150
    %v152 = vld [vmem:[%s8] sm:$0xff]
    %v153 = vld [vmem:[%s8 + $0x8] sm:$0xff]
    %vm154 = vcmask 130048
    %v156 = vsel %vm154, %v151, 0
    %158 = vmatpush.msra.mxu0 0.0
    %159 = vmatpush.msra.mxu0 0.0
    %160 = vmatpush.msra.mxu0 0.0
    %161 = vmatpush.msra.mxu0 0.0
    %162 = vmatpush.msra.mxu0 0.0
    %163 = vmatpush.msra.mxu0 0.0
    %164 = vmatpush.msra.mxu0 0.0
    %165 = vmatpush.msra.mxu0 0.0
    %166 = vmatpush.msra.mxu0 0.0
    %167 = vmatpush.msra.mxu0 0.0
    %168 = vmatpush.msra.mxu0 0.0
    %169 = vmatpush.msra.mxu0 0.0
    %170 = vmatpush.msra.mxu0 0.0
    %171 = vmatpush.msra.mxu0 0.0
    %172 = vmatpush.msra.mxu0 %v153
    %173 = vmatpush.msra.mxu0 %v152
    %174 = vmatmul.f32.gmra.mxu0 %v156
    %v175 = vpop.f32.mrf.mxu0
    %v176 = vadd.f32 0.0, %v175
    %177 = vdwg.mxu0
    %v178 = vadd.f32 %v145, %v176
    %v179 = vmax.f32 %v178, 0.0
    %v180 = vld [vmem:[%s10] sm:$0xff]
    %v181 = vld [vmem:[%s10 + $0x8] sm:$0xff]
    %v182 = vld [vmem:[%s10 + $0x10] sm:$0xff]
    %v183 = vld [vmem:[%s10 + $0x18] sm:$0xff]
    %v184 = vld [vmem:[%s11] sm:$0x1]
    %v186 = vperm.slane %v184, 0
    %vm188 = vcmask 261120
    %v190 = vsel %vm188, %v179, 0
    %192 = vmatpush.msra.mxu0 0.0
    %193 = vmatpush.msra.mxu0 0.0
    %194 = vmatpush.msra.mxu0 0.0
    %195 = vmatpush.msra.mxu0 0.0
    %196 = vmatpush.msra.mxu0 0.0
    %197 = vmatpush.msra.mxu0 0.0
    %198 = vmatpush.msra.mxu0 0.0
    %199 = vmatpush.msra.mxu0 0.0
    %200 = vmatpush.msra.mxu0 0.0
    %201 = vmatpush.msra.mxu0 0.0
    %202 = vmatpush.msra.mxu0 0.0
    %203 = vmatpush.msra.mxu0 0.0
    %204 = vmatpush.msra.mxu0 %v183
    %205 = vmatpush.msra.mxu0 %v182
    %206 = vmatpush.msra.mxu0 %v181
    %207 = vmatpush.msra.mxu0 %v180
    %208 = vmatmul.f32.gmra.mxu0 %v190
    %v209 = vpop.f32.mrf.mxu0
    %v210 = vadd.f32 %v186, %v209
    %211 = vdwg.mxu0
    %v212 = vmax.f32 %v210, 0.0
    %v213 = vld [vmem:[%s12] sm:$0xff]
    %v214 = vld [vmem:[%s12 + $0x8] sm:$0xff]
    %v216 = vsel %vm154, %v212, 0
    %218 = vmatpush.msra.mxu0 0.0
    %219 = vmatpush.msra.mxu0 0.0
    %220 = vmatpush.msra.mxu0 0.0
    %221 = vmatpush.msra.mxu0 0.0
    %222 = vmatpush.msra.mxu0 0.0
    %223 = vmatpush.msra.mxu0 0.0
    %224 = vmatpush.msra.mxu0 0.0
    %225 = vmatpush.msra.mxu0 0.0
    %226 = vmatpush.msra.mxu0 0.0
    %227 = vmatpush.msra.mxu0 0.0
    %228 = vmatpush.msra.mxu0 0.0
    %229 = vmatpush.msra.mxu0 0.0
    %230 = vmatpush.msra.mxu0 0.0
    %231 = vmatpush.msra.mxu0 0.0
    %232 = vmatpush.msra.mxu0 %v214
    %233 = vmatpush.msra.mxu0 %v213
    %234 = vmatmul.f32.gmra.mxu0 %v216
    %v235 = vpop.f32.mrf.mxu0
    %v236 = vadd.f32 0.0, %v235
    %237 = vdwg.mxu0
    %v238 = vadd.f32 %v70, %v236
    %v239 = vld [vmem:[#allocation2] sm:$0x1]
    %v241 = vperm.slane %v239, 0
    %v243 = vadd.f32 %v238, %v241
    %v244 = vmul.f32 %v243, 0.5
    %v245 = vxor.u32 %v244, 2147483648
    %v246 = vmul.f32 %v245, 1.442695
    %v247 = vpow.pop %v246
    %v248 = vadd.f32 %v247, 1.0
    %v249 = vrcp.pop %v248
    %v250 = vmul.f32 %v248, %v249
    %v251 = vsub.f32 1.0, %v250
    %v252 = vmul.f32 %v249, %v251
    %v253 = vadd.f32 %v249, %v252
    %vm254 = vweird.f32 %v248
    %vm255 = vweird.f32 %v249
    %vm256 = vmor %vm254, %vm255
    %v257 = vsel %vm256, %v249, %v253
    %v258 = vand.u32 2147483647, %v248
    %vm259 = vcmp.eq.f32.partialorder %v258, 8.507059e+37
    %v260 = vand.u32 %v248, 2147483648
    %v261 = vor.u32 1.1754944e-38, %v260
    %v262 = vsel %vm259, %v261, %v257
    %v263 = vmul.f32 1.0, %v262
    %264 = vxpose.xlu0.b32.start [1/16] %v263, 128
    %265 = vxpose.xlu0.b32.cont [2/16] 0.0, 128
    %266 = vxpose.xlu0.b32.cont [3/16] 0.0, 128
    %267 = vxpose.xlu0.b32.cont [4/16] 0.0, 128
    %268 = vxpose.xlu0.b32.cont [5/16] 0.0, 128
    %269 = vxpose.xlu0.b32.cont [6/16] 0.0, 128
    %270 = vxpose.xlu0.b32.cont [7/16] 0.0, 128
    %271 = vxpose.xlu0.b32.cont [8/16] 0.0, 128
    %272 = vxpose.xlu0.b32.cont [9/16] 0.0, 128
    %273 = vxpose.xlu0.b32.cont [10/16] 0.0, 128
    %274 = vxpose.xlu0.b32.cont [11/16] 0.0, 128
    %275 = vxpose.xlu0.b32.cont [12/16] 0.0, 128
    %276 = vxpose.xlu0.b32.cont [13/16] 0.0, 128
    %277 = vxpose.xlu0.b32.cont [14/16] 0.0, 128
    %278 = vxpose.xlu0.b32.cont [15/16] 0.0, 128
    %279 = vxpose.xlu0.b32.end [16/16] 0.0, 128
    %v280 = vpop.trf.xlu0
    %v281 = vpop.trf.xlu0
    %v282 = vpop.trf.xlu0
    %v283 = vpop.trf.xlu0
    %v284 = vpop.trf.xlu0
    %v285 = vpop.trf.xlu0
    %v286 = vpop.trf.xlu0
    %v287 = vpop.trf.xlu0
    %v288 = vpop.trf.xlu0
    %v289 = vpop.trf.xlu0
    %v290 = vpop.trf.xlu0
    %v291 = vpop.trf.xlu0
    %v292 = vpop.trf.xlu0
    %v293 = vpop.trf.xlu0
    %v294 = vpop.trf.xlu0
    %v295 = vpop.trf.xlu0
    %vm296 = vcmask 57344
    %297 = vst.msk [vmem:[#allocation3] sm:$0x1] %vm296, %v280
    // Predicated region
    $region54: #{tpu_custom_call.1} parent=1 // pred_check
      _
    $region55: #{tpu_custom_call.1} parent=1 // pred_check_branch
      %299 = sbr.rel (0) target = $region57
    $region56: #{tpu_custom_call.1} parent=1 // pred_region
      %301 = vsyncadd [#allocation4], 0
      %s303 = sshll.u32 [#allocation3], 4
      %s304 = int_to_ptr.vmem [resolvable:$true] %s303
      %s305 = sshll.u32 %s13, 4
      %s306 = int_to_ptr.hbm [resolvable:$true] %s305
      %308 = dma.vmem_to_hbm [thread:$0]  %s304, 16, %s306, [#allocation4]
    $region57: #{tpu_custom_call.1} parent=1 // pred_fallthru
      _
    // Predicated region
    $region58: #{tpu_custom_call.1} parent=1 // pred_check
      _
    $region59: #{tpu_custom_call.1} parent=1 // pred_check_branch
      %310 = sbr.rel (0) target = $region61
    $region60: #{tpu_custom_call.1} parent=1 // pred_region
      %312 = dma.done [#allocation4], 16
    $region61: #{tpu_custom_call.1} parent=1 // pred_fallthru
      _
    %313 = vsyncpa [#allocation4], 1

</llo_original>
